<compile_context>
chip_gen: v7x
topology: tpu7x:2x2x1
jax: 0.10.0
libtpu: 0.0.40
codegen_flags: <defaults>
</compile_context>

<pallas_src>
import functools
import math

import jax
import jax.numpy as jnp
from jax.experimental import pallas as pl
from jax.experimental.pallas import tpu as pltpu

_LOG_10000 = math.log(10000.0)
_HALF_PI = math.pi / 2.0


def _build_pe(max_len: int, d_model: int) -> jnp.ndarray:
    """Pure-JAX reference table, identical to the PyTorch __init__ (even d_model)."""
    position = jnp.arange(max_len, dtype=jnp.float32)[:, None]
    embedding_index = jnp.arange(0, d_model, 2, dtype=jnp.float32)
    div_term = 1.0 / (jnp.float32(10000.0) ** (embedding_index / d_model))
    angles = position * div_term
    pe = jnp.stack([jnp.sin(angles), jnp.cos(angles)], axis=-1).reshape(max_len, d_model)
    return pe


def _make_lane_table(d_model: int, cols: int) -> jnp.ndarray:
    """(8, cols) f32 table of column-only quantities (resident in VMEM).

    row 0: inv_freq[j]                                   (position multiplier)
    row 1: (c // d_model) * inv_freq[j] + (j & 1)*pi/2   (additive phase: folds the
           intra-slab position offset and the sin->cos shift)
    with j = c % d_model and c the lane index of the packed layout.
    """
    c = jnp.arange(cols, dtype=jnp.int32)
    j = c % d_model
    seq_off = (c // d_model).astype(jnp.float32)
    pair = (j - (j & 1)).astype(jnp.float32)              # the "2i" in the formula
    inv_freq = jnp.exp(pair * (-_LOG_10000 / d_model))    # == 10000^(-2i/d_model)
    phase = (j & 1).astype(jnp.float32) * _HALF_PI + seq_off * inv_freq
    tab = jnp.zeros((8, cols), jnp.float32)
    tab = tab.at[0, :].set(inv_freq).at[1, :].set(phase)
    return tab


def _pe_add_kernel(tab_ref, x_ref, o_ref, *, pos_per_row: int):
    """out = x + PE.  Per element: 1 mul + 2 add + 1 sin; all column-only work
    lives in the tiny resident table, all row-only work in a (br, 1) column."""
    br, _ = x_ref.shape
    i = pl.program_id(0)
    r = jax.lax.broadcasted_iota(jnp.int32, (br, 1), 0)
    # NOTE: positions are exact in f32 up to 2^24 — far beyond realistic seq_len.
    pos = ((i * br + r) * pos_per_row).astype(jnp.float32)   # (br, 1)
    freq = tab_ref[0:1, :]                                    # (1, cols)
    phase = tab_ref[1:2, :]                                   # (1, cols)
    pe = jnp.sin(pos * freq + phase)                          # cos(x) == sin(x + pi/2)
    o_ref[...] = (x_ref[...].astype(jnp.float32) + pe).astype(o_ref.dtype)


def _choose_packing(seq_len: int, d_model: int, max_lanes: int = 1024):
    """Return (k, cols): pack k consecutive positions per lane-dense row of
    cols = k * d_model lanes (a pure, contiguous -> free reshape)."""
    if d_model % 128 == 0:
        return 1, d_model                      # already unmasked full-width stores
    k0 = 128 // math.gcd(d_model, 128)         # smallest k with (k*d_model) % 128 == 0
    if seq_len % k0 != 0:
        return 1, d_model                      # correct fallback (masked stores)
    k = k0
    m = 2
    while k0 * m * d_model <= max_lanes:       # widen the slab when cheaply possible
        if seq_len % (k0 * m) == 0:
            k = k0 * m
        m += 1
    return k, k * d_model


def _vmem_target_bytes() -> int:
    """Per-buffer block-size target, generation aware (no vmem_limit override needed)."""
    try:
        kind = jax.devices()[0].device_kind.lower()
    except Exception:
        kind = ""
    if "v5" in kind:
        return 2 * 1024 * 1024    # 16 MiB default scoped VMEM -> 4 bufs x 2 MiB = 8 MiB
    if "v6" in kind:
        return 6 * 1024 * 1024    # 32 MiB default scoped VMEM -> 24 MiB total
    return 4 * 1024 * 1024        # v7x (64 MiB physical/TC) / unknown -> 16 MiB total


def _choose_block_rows(rows: int, cols: int, itemsize: int, override=None) -> int:
    if override is not None:
        ts = int(override)
    else:
        ts = max(1, _vmem_target_bytes() // (cols * itemsize))
    ts = max(8, (ts // 8) * 8)                 # sublane multiple
    return min(rows, ts)                       # block == full dim is always legal


def position_encoding_forward(word_embeddings: jnp.ndarray,
                              *,
                              max_len: int | None = None,
                              block_rows: int | None = None,
                              in_place: bool = False) -> jnp.ndarray:
    """Equivalent of PositionEncoding.forward: word_embeddings + pe[:seq_len, :]."""
    seq_len, d_model = word_embeddings.shape
    assert d_model % 2 == 0, "d_model must be even (as in the PyTorch module)"
    if max_len is not None:
        assert seq_len <= max_len, "sequence longer than max_len"

    k, cols = _choose_packing(seq_len, d_model)
    rows = seq_len // k
    x2 = word_embeddings.reshape(rows, cols)        # contiguous -> free reshape
    tab = _make_lane_table(d_model, cols)            # a few KiB, resident across grid

    itemsize = jnp.dtype(word_embeddings.dtype).itemsize
    ts = _choose_block_rows(rows, cols, itemsize, block_rows)

    kernel = functools.partial(_pe_add_kernel, pos_per_row=k)
    out = pl.pallas_call(
        kernel,
        out_shape=jax.ShapeDtypeStruct((rows, cols), word_embeddings.dtype),
        grid=(pl.cdiv(rows, ts),),
        in_specs=[pl.BlockSpec((8, cols), lambda i: (0, 0)),       # resident lane table
                  pl.BlockSpec((ts, cols), lambda i: (i, 0))],
        out_specs=pl.BlockSpec((ts, cols), lambda i: (i, 0)),
        compiler_params=pltpu.CompilerParams(dimension_semantics=("parallel",)),
        input_output_aliases={1: 0} if in_place else {},
    )(tab, x2)
    return out.reshape(seq_len, d_model)


if __name__ == "__main__":
    key = jax.random.PRNGKey(0)
    k1, k2, k3, k4 = jax.random.split(key, 4)

    # 1) Module defaults: d_model=2, max_len=6 (tiny unpacked fallback path).
    d1, s1 = 2, 6
    x1 = jax.random.normal(k1, (s1, d1), dtype=jnp.float32)
    o1 = jax.block_until_ready(position_encoding_forward(x1, max_len=6))
    assert o1.shape == (s1, d1)
    assert jnp.allclose(o1, x1 + _build_pe(6, d1)[:s1], atol=1e-5), "mismatch (d_model=2)"

    # 2) Narrow hidden: d_model=32, seq=8 -> lane-dense packed slab (k=8 -> 256 lanes).
    d2, s2 = 32, 8
    x2 = jax.random.normal(k2, (s2, d2), dtype=jnp.float32)
    o2 = jax.block_until_ready(position_encoding_forward(x2, max_len=16))
    assert jnp.allclose(o2, x2 + _build_pe(16, d2)[:s2], atol=1e-5), "mismatch (packed)"

    # 3) d_model multiple of 128, multi-block grid with a partial last block.
    d3, s3 = 128, 20
    x3 = jax.random.normal(k3, (s3, d3), dtype=jnp.float32)
    o3 = jax.block_until_ready(position_encoding_forward(x3, block_rows=8))
    assert jnp.allclose(o3, x3 + _build_pe(s3, d3)[:s3], atol=1e-5), "mismatch (tiled)"

    # 4) Non-power-of-two d_model < 128 (packed via k=4 -> 384 lanes).
    d4, s4 = 96, 12
    x4 = jax.random.normal(k4, (s4, d4), dtype=jnp.float32)
    o4 = jax.block_until_ready(position_encoding_forward(x4))
    assert jnp.allclose(o4, x4 + _build_pe(s4, d4)[:s4], atol=1e-5), "mismatch (d_model=96)"

    print("KERNEL_OK")
</pallas_src>

<mosaic_0001>
module attributes {stable_mosaic.version = 11 : i64} {
  func.func @_pe_add_kernel(%arg0: i32, %arg1: memref<8x2xf32, #tpu.memory_space<vmem>>, %arg2: memref<6x2xf32, #tpu.memory_space<vmem>>, %arg3: memref<6x2xf32, #tpu.memory_space<vmem>>) attributes {dimension_semantics = [#tpu.dimension_semantics<parallel>], iteration_bounds = array<i64: 1>, scalar_prefetch = 0 : i64, scratch_operands = 0 : i64, tpu.core_type = #tpu.core_type<tc>, window_params = [{pipeline_mode = #tpu.pipeline_mode<synchronous>, transform_indices = @transform_0, window_bounds = array<i64: 8, 2>}, {transform_indices = @transform_1, window_bounds = array<i64: 6, 2>}, {transform_indices = @transform_2, window_bounds = array<i64: 6, 2>}]} {
    %0 = tpu.iota {dimensions = array<i32: 0>} : vector<6x1xi32>
    %c6_i32 = arith.constant 6 : i32
    %1 = arith.muli %arg0, %c6_i32 : i32
    %2 = vector.broadcast %1 : i32 to vector<6x1xi32>
    %3 = arith.addi %2, %0 : vector<6x1xi32>
    %c1_i32 = arith.constant 1 : i32
    %4 = vector.broadcast %c1_i32 : i32 to vector<6x1xi32>
    %5 = arith.muli %3, %4 : vector<6x1xi32>
    %6 = arith.sitofp %5 : vector<6x1xi32> to vector<6x1xf32>
    %c0 = arith.constant 0 : index
    %c0_0 = arith.constant 0 : index
    %7 = vector.load %arg1[%c0, %c0_0] : memref<8x2xf32, #tpu.memory_space<vmem>>, vector<1x2xf32>
    %c1 = arith.constant 1 : index
    %c0_1 = arith.constant 0 : index
    %8 = vector.load %arg1[%c1, %c0_1] : memref<8x2xf32, #tpu.memory_space<vmem>>, vector<1x2xf32>
    %9 = vector.broadcast %6 : vector<6x1xf32> to vector<6x2xf32>
    %10 = vector.broadcast %7 : vector<1x2xf32> to vector<6x2xf32>
    %11 = arith.mulf %9, %10 : vector<6x2xf32>
    %12 = vector.broadcast %8 : vector<1x2xf32> to vector<6x2xf32>
    %13 = arith.addf %11, %12 : vector<6x2xf32>
    %14 = math.sin %13 : vector<6x2xf32>
    %c0_2 = arith.constant 0 : index
    %c0_3 = arith.constant 0 : index
    %15 = vector.load %arg2[%c0_2, %c0_3] : memref<6x2xf32, #tpu.memory_space<vmem>>, vector<6x2xf32>
    %16 = arith.addf %15, %14 : vector<6x2xf32>
    %c0_4 = arith.constant 0 : index
    %c0_5 = arith.constant 0 : index
    %17 = vector.load %arg3[%c0_4, %c0_5] : memref<6x2xf32, #tpu.memory_space<vmem>>, vector<6x2xf32>
    tpu.vector_store %arg3[%c0_4, %c0_5], %16 {strides = array<i32>} : memref<6x2xf32, #tpu.memory_space<vmem>>, vector<6x2xf32>,
    return
  }
  func.func @transform_0(%arg0: i32) -> (i32, i32) {
    %c0_i32 = arith.constant 0 : i32
    %c0_i32_0 = arith.constant 0 : i32
    %c0_i32_1 = arith.constant 0 : i32
    return %c0_i32, %c0_i32_0 : i32, i32
  }
  func.func @transform_1(%arg0: i32) -> (i32, i32) {
    %c0_i32 = arith.constant 0 : i32
    %c0_i32_0 = arith.constant 0 : i32
    return %arg0, %c0_i32 : i32, i32
  }
  func.func @transform_2(%arg0: i32) -> (i32, i32) {
    %c0_i32 = arith.constant 0 : i32
    %c0_i32_0 = arith.constant 0 : i32
    return %arg0, %c0_i32 : i32, i32
  }
}

</mosaic_0001>

<llo_original>
// kernel: tpu_custom_call.1
$region0: #{tpu_custom_call.1}
  #allocation0 [shape = 'u32[]', space=smem, size = 0x4, offset = 0x4, fixed_abs, tag = 'smem constant byte address 0x4 - core index']
  #allocation1 [shape = 'u32[144,128]{1,0:T(1,128)}', space=vmem, size = 0x12000, scoped, tag = 'internal scratch']
  %s0 = inlined_call_operand.vmem [shape: f32[8,2], index: 0, kind: input, shape index: {}]
  %s1 = inlined_call_operand.vmem [shape: f32[6,2], index: 1, kind: input, shape index: {}]
  %s2 = inlined_call_operand.vmem [shape: f32[6,2], index: 2, kind: output, shape index: {}]
  %s3 = sld [smem:[#allocation0]]
  $region18: #{tpu_custom_call.1} parent=0
    _
  %s5 = ssub.s32 1, %s3
  %s6 = scalar_select 0, %s5, %s3
  // Predicated region
  $region2: #{tpu_custom_call.1} parent=0 // pred_check
    _
  $region3: #{tpu_custom_call.1} parent=0 // pred_check_branch
    %8 = sbr.rel (0) target = $region5
  $region4: #{tpu_custom_call.1} parent=0 // pred_region
    _
  $region5: #{tpu_custom_call.1} parent=0 // pred_fallthru
    _
  // Predicated region
  $region6: #{tpu_custom_call.1} parent=0 // pred_check
    _
  $region7: #{tpu_custom_call.1} parent=0 // pred_check_branch
    %10 = sbr.rel (0) target = $region9
  $region8: #{tpu_custom_call.1} parent=0 // pred_region
    _
  $region9: #{tpu_custom_call.1} parent=0 // pred_fallthru
    _
  %v11 = vlaneseq
  %v12 = vshrl.u32 %v11, 7
  %s13 = smul.u32 0, 6
  %v14 = vstv %s13
  %v15 = vadd.s32 %v14, %v12
  %v16 = vcvt.s32.f32 %v15
  %v17 = vld [vmem:[%s0] sm:$0x1]
  %v18 = vld [vmem:[%s0 + $0x1] sm:$0x1]
  %v19 = vlaneseq
  %v20 = vshrl.u32 %v19, 7
  %v21 = vsub.s32 0, %v20
  %v22 = vrot.slane %v17, %v21
  %v23 = vmul.f32 %v16, %v22
  %v24 = vlaneseq
  %v25 = vshrl.u32 %v24, 7
  %v26 = vsub.s32 0, %v25
  %v27 = vrot.slane %v18, %v26
  %v28 = vadd.f32 %v23, %v27
  %v29 = vand.u32 2147483647, %v28
  %vm30 = vcmp.le.f32.partialorder %v29, 0.7853982
  %vm31 = vcmp.lt.s32.totalorder %v28, 0
  %v32 = vand.u32 %v28, 2139095040
  %v33 = vshrl.u32 %v32, 23
  %v34 = vsub.s32 %v33, 127
  %v35 = vand.u32 2147483647, %v28
  %v36 = vand.u32 %v35, 8388607
  %v37 = vor.u32 %v36, 8388608
  %v38 = vsub.s32 0, %v37
  %v39 = vadd.s32 %v34, 1
  %vm40 = vcmp.gt.s32.totalorder %v39, 0
  %v41 = vsel %vm40, %v39, 0
  %v42 = vshrl.u32 %v41, 5
  %v43 = vand.u32 %v41, 31
  %v44 = vsub.s32 32, %v43
  %v45 = vshrl.u32 683565275, %v44
  %v46 = vshll.u32 683565275, %v43
  %v47 = vshrl.u32 2475754826, %v44
  %v48 = vor.u32 %v46, %v47
  %v49 = vshll.u32 2475754826, %v43
  %v50 = vshrl.u32 2131351028, %v44
  %v51 = vor.u32 %v49, %v50
  %v52 = vshll.u32 2131351028, %v43
  %v53 = vshrl.u32 2102212464, %v44
  %v54 = vor.u32 %v52, %v53
  %v55 = vshll.u32 2102212464, %v43
  %v56 = vshrl.u32 920167782, %v44
  %v57 = vor.u32 %v55, %v56
  %v58 = vshll.u32 920167782, %v43
  %v59 = vshrl.u32 1326507024, %v44
  %v60 = vor.u32 %v58, %v59
  %vm61 = vcmp.lt.s32.totalorder %v42, 1
  %vm62 = vcmp.lt.s32.totalorder %v42, 2
  %vm63 = vcmp.lt.s32.totalorder %v42, 3
  %vm64 = vcmp.lt.s32.totalorder %v42, 4
  %v65 = vsel %vm61, %v45, %v48
  %v66 = vsel %vm64, %v54, 2102212464
  %v67 = vsel %vm63, %v51, %v66
  %v68 = vsel %vm62, %v65, %v67
  %v69 = vsel %vm61, %v48, %v51
  %v70 = vsel %vm64, %v57, 920167782
  %v71 = vsel %vm63, %v54, %v70
  %v72 = vsel %vm62, %v69, %v71
  %v73 = vsel %vm61, %v51, %v54
  %v74 = vsel %vm64, %v60, 1326507024
  %v75 = vsel %vm63, %v57, %v74
  %v76 = vsel %vm62, %v73, %v75
  %v77 = vshll.u32 %v37, 8
  %v78 = vmul.u32.u64.compose %v77, %v76
  %v79 = vextract.low.u32 %v78
  %v80 = vextract.high.u32 %v78
  %v81 = vmul.u32.u64.compose %v77, %v72
  %v82 = vextract.low.u32 %v81
  %v83 = vextract.high.u32 %v81
  %v84 = vmul.u32 %v77, %v68
  %v85 = vadd.s32 %v80, %v82
  %vm86 = vc.u32 %v80, %v82
  %v87 = vadd.s32 %v83, 1
  %v88 = vsel %vm86, %v87, %v83
  %v89 = vadd.s32 %v84, %v88
  %v90 = vadd.s32 %v89, 536870912
  %v91 = vshrl.u32 %v90, 30
  %v92 = vshll.u32 %v91, 30
  %v93 = vsub.s32 %v89, %v92
  %vm94 = vcmp.lt.s32.totalorder %v93, 0
  %v95 = vsub.s32 0, %v93
  %v96 = vsel %vm94, %v95, %v93
  %v97 = vclz %v96
  %v98 = vsub.s32 %v97, 2
  %vm99 = vcmp.gt.s32.totalorder 0, %v98
  %v100 = vsel %vm99, 0, %v98
  %v101 = vsub.s32 32, %v100
  %v102 = vshll.u32 %v93, %v100
  %v103 = vshrl.u32 %v85, %v101
  %v104 = vor.u32 %v102, %v103
  %v105 = vsub.s32 4294967266, %v100
  %v106 = vadd.s32 %v105, 127
  %v107 = vshll.u32 %v106, 23
  %v108 = vor.u32 4788187, %v107
  %v109 = vand.u32 2147483647, %v108
  %v111 = vcvt.s32.f32 %v104
  %v112 = vmul.f32 %v111, %v109
  %v113 = vxor.u32 %v112, 2147483648
  %v114 = vsel %vm31, %v113, %v112
  %v115 = vsub.s32 4, %v91
  %v116 = vsel %vm31, %v115, %v91
  %v117 = vsel %vm30, %v28, %v114
  %v118 = vsel %vm30, 0, %v116
  %v119 = vcosq.f32.pop %v117
  %v120 = vsinq.f32.pop %v117
  %vm121 = vweird.f32 %v28
  %v122 = vadd.s32 %v118, 3
  %v123 = vand.u32 %v122, 3
  %vm124 = vcmp.lt.s32.totalorder %v123, 2
  %vm125 = vcmp.eq.s32.totalorder %v123, 0
  %v126 = vxor.u32 %v120, 2147483648
  %v127 = vsel %vm125, %v119, %v126
  %vm128 = vcmp.eq.s32.totalorder %v123, 2
  %v129 = vxor.u32 %v119, 2147483648
  %v130 = vsel %vm128, %v129, %v120
  %v131 = vsel %vm124, %v127, %v130
  %v132 = vsel %vm121, nan, %v131
  %v133 = vld [vmem:[%s1] sm:$0x3f]
  %v134 = vadd.f32 %v133, %v132
  %vm135 = vcmask 13312
  %136 = vst.msk [vmem:[%s2] sm:$0x3f] %vm135, %v134
  // Predicated region
  $region10: #{tpu_custom_call.1} parent=0 // pred_check
    _
  $region11: #{tpu_custom_call.1} parent=0 // pred_check_branch
    %138 = sbr.rel (0) target = $region13
  $region12: #{tpu_custom_call.1} parent=0 // pred_region
    _
  $region13: #{tpu_custom_call.1} parent=0 // pred_fallthru
    _
  // Predicated region
  $region14: #{tpu_custom_call.1} parent=0 // pred_check
    _
  $region15: #{tpu_custom_call.1} parent=0 // pred_check_branch
    %140 = sbr.rel (0) target = $region17
  $region16: #{tpu_custom_call.1} parent=0 // pred_region
    _
  $region17: #{tpu_custom_call.1} parent=0 // pred_fallthru
    _

</llo_original>
